<compile_context>
chip_gen: v7x
topology: tpu7x:2x2x1
jax: 0.10.0
libtpu: 0.0.40
codegen_flags: <defaults>
</compile_context>

<pallas_src>
import math

import jax
import jax.numpy as jnp
from jax.experimental import pallas as pl
from jax.experimental.pallas import tpu as pltpu


# ------------------------------ Pallas kernel -------------------------------

def make_gin_kernel(num_layers, num_graphs):
    """Build the fused forward kernel for a GIN with `num_layers` GINEConv layers."""

    def kernel(*refs):
        ge_ref, dst_ref, batch_ref, x_ref = refs[:4]
        layer_refs = refs[4:4 + 4 * num_layers]
        wf_ref = refs[4 + 4 * num_layers]
        bf_ref = refs[5 + 4 * num_layers]
        out_ref = refs[-1]

        ge = ge_ref[...]                                   # [E, N_pad + De] bf16
        n_pad = x_ref.shape[0]
        num_e = ge.shape[0]

        # Scatter-add operator built in-kernel from dst indices (no [N,E] HBM operand,
        # no wrapper-side transpose/relayout).  sdst[i, e] = (dst[e] == i).
        sdst = (jax.lax.broadcasted_iota(jnp.int32, (n_pad, num_e), 0)
                == dst_ref[...]).astype(jnp.bfloat16)      # [N_pad, E]

        # Graph-membership operator for mean pooling (0/1 exact in bf16); divide by
        # the f32 node count AFTER accumulation for exactness.
        memb = (jax.lax.broadcasted_iota(jnp.int32, (num_graphs, n_pad), 0)
                == batch_ref[...]).astype(jnp.bfloat16)    # [B, N_pad]
        counts = jnp.sum(memb.astype(jnp.float32), axis=1, keepdims=True)
        inv_counts = 1.0 / jnp.maximum(counts, 1.0)        # [B, 1] f32

        h = x_ref[...].astype(jnp.float32)                 # [N_pad, F0], f32-resident

        for l in range(num_layers):
            we_ref, be_ref, w12_ref, b12_ref = layer_refs[4 * l: 4 * l + 4]
            # Single fused gather + edge-projection matmul:
            #   [one_hot(src) | eattr] @ [[h],[we]]  ==  gather(h, src) + eattr @ we
            hw = jnp.concatenate([h, we_ref[...]], axis=0).astype(jnp.bfloat16)
            msg = jnp.maximum(
                jnp.dot(ge, hw, preferred_element_type=jnp.float32) + be_ref[...],
                0.0)                                       # [E, F_in] f32
            # scatter-add messages to destination nodes
            aggr = jnp.dot(sdst, msg.astype(jnp.bfloat16),
                           preferred_element_type=jnp.float32)   # [N_pad, F_in]
            hh = aggr + h                                   # (1 + eps) * x + aggr, eps=0
            # fused GINEConv nn (Linear -> Linear collapsed to one weight)
            z = jnp.dot(hh.astype(jnp.bfloat16), w12_ref[...],
                        preferred_element_type=jnp.float32) + b12_ref[...]
            h = jnp.maximum(z, 0.0)                         # model-level ReLU, stays f32

        # global mean pool (exact) + Linear + Softmax(dim=1)
        pooled = jnp.dot(memb, h.astype(jnp.bfloat16),
                         preferred_element_type=jnp.float32) * inv_counts   # [B, F]
        logits = jnp.dot(pooled.astype(jnp.bfloat16), wf_ref[...],
                         preferred_element_type=jnp.float32) + bf_ref[...]  # [B, C]
        m = jnp.max(logits, axis=1, keepdims=True)
        e = jnp.exp(logits - m)
        out_ref[...] = e / jnp.sum(e, axis=1, keepdims=True)  # exact normalization

    return kernel


# ------------------------------- wrapper -------------------------------------

def gin_forward(x, edge_index, edge_attr, batch, params, num_graphs):
    """Full GIN forward, one fused pallas_call. Structural setup stays in the wrapper."""
    n = x.shape[0]
    num_e = edge_index.shape[1]
    de = edge_attr.shape[1]
    src, dst = edge_index[0], edge_index[1]

    # Pad the node axis so the in-kernel sublane concat offset is tile-aligned.
    n_pad = ((n + 7) // 8) * 8

    # Fused gather + edge-projection LHS operand: [one_hot(src) | edge_attr].
    gsrc = jax.nn.one_hot(src, n_pad, dtype=jnp.float32)                 # [E, N_pad]
    ge = jnp.concatenate([gsrc, edge_attr], axis=1).astype(jnp.bfloat16)  # [E, N_pad+De]

    dst_row = dst.reshape(1, num_e).astype(jnp.int32)                    # [1, E]
    batch_pad = jnp.concatenate([batch.astype(jnp.int32),
                                 jnp.full((n_pad - n,), -1, jnp.int32)])
    batch_row = batch_pad.reshape(1, n_pad)                              # [1, N_pad]

    x_pad = jnp.pad(x, ((0, n_pad - n), (0, 0))).astype(jnp.bfloat16)    # [N_pad, F0]

    operands = [ge, dst_row, batch_row, x_pad]

    flops = 0
    for lp in params["layers"]:
        we = lp["we"]                                       # [De, F_in] f32 (concat in f32)
        # Collapse the GINEConv nn's two Linears (no activation between) — exact.
        w12 = (lp["w1"] @ lp["w2"]).astype(jnp.bfloat16)    # [F_in, F_out]
        b12 = lp["b1"] @ lp["w2"] + lp["b2"]                # [1, F_out] f32
        operands += [we, lp["be"], w12, b12]
        f_in, f_out = w12.shape
        flops += 2 * (num_e * (n_pad + de) * f_in           # fused gather + edge proj
                      + n_pad * num_e * f_in                # scatter-add
                      + n_pad * f_in * f_out)               # fused MLP

    wf = params["ffn_w"].astype(jnp.bfloat16)               # [F_last, C]
    bf = params["ffn_b"]
    operands += [wf, bf]
    f_last, num_classes = wf.shape
    flops += 2 * (num_graphs * n_pad * f_last + num_graphs * f_last * num_classes)

    bytes_accessed = int(sum(int(o.size) * o.dtype.itemsize for o in operands)
                         + num_graphs * num_classes * 4)
    cost = pl.CostEstimate(flops=int(flops),
                           transcendentals=int(num_graphs * num_classes),
                           bytes_accessed=bytes_accessed)

    kernel = make_gin_kernel(len(params["layers"]), num_graphs)
    return pl.pallas_call(
        kernel,
        out_shape=jax.ShapeDtypeStruct((num_graphs, num_classes), jnp.float32),
        in_specs=[pl.BlockSpec(memory_space=pltpu.VMEM)] * len(operands),
        out_specs=pl.BlockSpec(memory_space=pltpu.VMEM),
        cost_estimate=cost,
    )(*operands)


# --------------------------- pure-JAX reference -------------------------------

def gin_reference(x, edge_index, edge_attr, batch, params, num_graphs):
    n = x.shape[0]
    src, dst = edge_index[0], edge_index[1]
    gsrc = jax.nn.one_hot(src, n, dtype=jnp.float32)
    sdst = jax.nn.one_hot(dst, n, dtype=jnp.float32).T
    memb = jax.nn.one_hot(batch, num_graphs, dtype=jnp.float32).T
    counts = jnp.maximum(jnp.sum(memb, axis=1, keepdims=True), 1.0)
    pool = memb / counts
    h = x
    for lp in params["layers"]:
        x_src = gsrc @ h
        e_emb = edge_attr @ lp["we"] + lp["be"]
        msg = jnp.maximum(x_src + e_emb, 0.0)
        aggr = sdst @ msg
        hh = aggr + h
        hh = hh @ lp["w1"] + lp["b1"]
        hh = hh @ lp["w2"] + lp["b2"]
        h = jnp.maximum(hh, 0.0)
    pooled = pool @ h
    logits = pooled @ params["ffn_w"] + params["ffn_b"]
    return jax.nn.softmax(logits, axis=1)


# ---------------------------- parameter setup ---------------------------------

def init_params(key, dim_node, dim_hidden, num_classes, edge_dim):
    # Weights stored pre-transposed as [in_features, out_features]; biases [1, out].
    def lin(key, in_f, out_f):
        k1, k2 = jax.random.split(key)
        bound = 1.0 / math.sqrt(in_f)
        w = jax.random.uniform(k1, (in_f, out_f), jnp.float32, -bound, bound)
        b = jax.random.uniform(k2, (1, out_f), jnp.float32, -bound, bound)
        return w, b

    dims = [dim_node] + list(dim_hidden)
    layers = []
    for i in range(len(dim_hidden)):
        f_in, f_out = dims[i], dims[i + 1]
        mid = (f_in + f_out) // 2
        key, k_e, k_1, k_2 = jax.random.split(key, 4)
        we, be = lin(k_e, edge_dim, f_in)     # GINEConv edge lin: edge_dim -> f_in
        w1, b1 = lin(k_1, f_in, mid)
        w2, b2 = lin(k_2, mid, f_out)
        layers.append(dict(we=we, be=be, w1=w1, b1=b1, w2=w2, b2=b2))
    key, k_f = jax.random.split(key)
    ffn_w, ffn_b = lin(k_f, dim_hidden[-1], num_classes)
    return dict(layers=layers, ffn_w=ffn_w, ffn_b=ffn_b)


# ---------------------------------- main ---------------------------------------

if __name__ == "__main__":
    dim_node, dim_hidden, num_classes, edge_dim = 8, [16, 16], 4, 6
    N, E, B = 12, 24, 2

    key = jax.random.PRNGKey(0)
    key, kx, ke, ks, kd = jax.random.split(key, 5)

    x = jax.random.normal(kx, (N, dim_node), jnp.float32)
    edge_attr = jax.random.normal(ke, (E, edge_dim), jnp.float32)
    src = jax.random.randint(ks, (E,), 0, N)
    dst = jax.random.randint(kd, (E,), 0, N)
    edge_index = jnp.stack([src, dst], axis=0)
    batch = jnp.concatenate([jnp.zeros(N // 2, jnp.int32),
                             jnp.ones(N - N // 2, jnp.int32)])

    params = init_params(key, dim_node, dim_hidden, num_classes, edge_dim)

    out = gin_forward(x, edge_index, edge_attr, batch, params, num_graphs=B)
    out = jax.block_until_ready(out)

    assert out.shape == (B, num_classes)
    assert bool(jnp.all(jnp.isfinite(out)))
    # exact softmax normalization -> tight tolerance
    assert bool(jnp.allclose(jnp.sum(out, axis=1), 1.0, atol=1e-3))
    # matches f32 pure-JAX reference up to bf16 matmul precision
    ref = gin_reference(x, edge_index, edge_attr, batch, params, num_graphs=B)
    assert bool(jnp.max(jnp.abs(out - ref)) < 0.1)
    print("KERNEL_OK")
</pallas_src>

<mosaic_0001>
module attributes {stable_mosaic.version = 11 : i64} {
  func.func @kernel(%arg0: memref<24x22xbf16, #tpu.memory_space<vmem>>, %arg1: memref<1x24xi32, #tpu.memory_space<vmem>>, %arg2: memref<1x16xi32, #tpu.memory_space<vmem>>, %arg3: memref<16x8xbf16, #tpu.memory_space<vmem>>, %arg4: memref<6x8xf32, #tpu.memory_space<vmem>>, %arg5: memref<1x8xf32, #tpu.memory_space<vmem>>, %arg6: memref<8x16xbf16, #tpu.memory_space<vmem>>, %arg7: memref<1x16xf32, #tpu.memory_space<vmem>>, %arg8: memref<6x16xf32, #tpu.memory_space<vmem>>, %arg9: memref<1x16xf32, #tpu.memory_space<vmem>>, %arg10: memref<16x16xbf16, #tpu.memory_space<vmem>>, %arg11: memref<1x16xf32, #tpu.memory_space<vmem>>, %arg12: memref<16x4xbf16, #tpu.memory_space<vmem>>, %arg13: memref<1x4xf32, #tpu.memory_space<vmem>>, %arg14: memref<2x4xf32, #tpu.memory_space<vmem>>) attributes {dimension_semantics = [], scalar_prefetch = 0 : i64, scratch_operands = 0 : i64, tpu.core_type = #tpu.core_type<tc>} {
    %c0 = arith.constant 0 : index
    %c0_0 = arith.constant 0 : index
    %0 = vector.load %arg0[%c0, %c0_0] : memref<24x22xbf16, #tpu.memory_space<vmem>>, vector<24x22xbf16>
    %1 = tpu.iota {dimensions = array<i32: 0>} : vector<16x24xi32>
    %c0_1 = arith.constant 0 : index
    %c0_2 = arith.constant 0 : index
    %2 = vector.load %arg1[%c0_1, %c0_2] : memref<1x24xi32, #tpu.memory_space<vmem>>, vector<1x24xi32>
    %3 = vector.broadcast %2 : vector<1x24xi32> to vector<16x24xi32>
    %4 = arith.cmpi eq, %1, %3 : vector<16x24xi32>
    %5 = arith.extui %4 : vector<16x24xi1> to vector<16x24xi32>
    %6 = arith.sitofp %5 : vector<16x24xi32> to vector<16x24xf32>
    %7 = arith.truncf %6 : vector<16x24xf32> to vector<16x24xbf16>
    %8 = tpu.iota {dimensions = array<i32: 0>} : vector<2x16xi32>
    %c0_3 = arith.constant 0 : index
    %c0_4 = arith.constant 0 : index
    %9 = vector.load %arg2[%c0_3, %c0_4] : memref<1x16xi32, #tpu.memory_space<vmem>>, vector<1x16xi32>
    %10 = vector.broadcast %9 : vector<1x16xi32> to vector<2x16xi32>
    %11 = arith.cmpi eq, %8, %10 : vector<2x16xi32>
    %12 = arith.extui %11 : vector<2x16xi1> to vector<2x16xi32>
    %13 = arith.sitofp %12 : vector<2x16xi32> to vector<2x16xf32>
    %14 = arith.truncf %13 : vector<2x16xf32> to vector<2x16xbf16>
    %15 = arith.extf %14 : vector<2x16xbf16> to vector<2x16xf32>
    %cst = arith.constant dense<0.000000e+00> : vector<2xf32>
    %16 = vector.multi_reduction <add>, %15, %cst [1] : vector<2x16xf32> to vector<2xf32>
    %17 = vector.shape_cast %16 : vector<2xf32> to vector<2x1xf32>
    %cst_5 = arith.constant 1.000000e+00 : f32
    %18 = vector.broadcast %cst_5 : f32 to vector<2x1xf32>
    %19 = arith.maximumf %17, %18 : vector<2x1xf32>
    %cst_6 = arith.constant 1.000000e+00 : f32
    %20 = vector.broadcast %cst_6 : f32 to vector<2x1xf32>
    %21 = arith.divf %20, %19 : vector<2x1xf32>
    %c0_7 = arith.constant 0 : index
    %c0_8 = arith.constant 0 : index
    %22 = vector.load %arg3[%c0_7, %c0_8] : memref<16x8xbf16, #tpu.memory_space<vmem>>, vector<16x8xbf16>
    %23 = arith.extf %22 : vector<16x8xbf16> to vector<16x8xf32>
    %c0_9 = arith.constant 0 : index
    %c0_10 = arith.constant 0 : index
    %24 = vector.load %arg4[%c0_9, %c0_10] : memref<6x8xf32, #tpu.memory_space<vmem>>, vector<6x8xf32>
    %25 = tpu.concatenate %23, %24 in 0 : vector<16x8xf32>, vector<6x8xf32> -> vector<22x8xf32>
    %26 = arith.truncf %25 : vector<22x8xf32> to vector<22x8xbf16>
    %cst_11 = arith.constant dense<0.000000e+00> : vector<24x8xf32>
    %27 = tpu.matmul %0, %26, %cst_11 {dimension_numbers = #tpu.dot_dimension_numbers<[1], [0], [0], [1], [0, 0, 1, 1], [], []>} : vector<24x22xbf16>, vector<22x8xbf16>, vector<24x8xf32> -> vector<24x8xf32>
    %c0_12 = arith.constant 0 : index
    %c0_13 = arith.constant 0 : index
    %28 = vector.load %arg5[%c0_12, %c0_13] : memref<1x8xf32, #tpu.memory_space<vmem>>, vector<1x8xf32>
    %29 = vector.broadcast %28 : vector<1x8xf32> to vector<24x8xf32>
    %30 = arith.addf %27, %29 : vector<24x8xf32>
    %cst_14 = arith.constant 0.000000e+00 : f32
    %31 = vector.broadcast %cst_14 : f32 to vector<24x8xf32>
    %32 = arith.maximumf %30, %31 : vector<24x8xf32>
    %33 = arith.truncf %32 : vector<24x8xf32> to vector<24x8xbf16>
    %cst_15 = arith.constant dense<0.000000e+00> : vector<16x8xf32>
    %34 = tpu.matmul %7, %33, %cst_15 {dimension_numbers = #tpu.dot_dimension_numbers<[1], [0], [0], [1], [0, 0, 1, 1], [], []>} : vector<16x24xbf16>, vector<24x8xbf16>, vector<16x8xf32> -> vector<16x8xf32>
    %35 = arith.addf %34, %23 : vector<16x8xf32>
    %36 = arith.truncf %35 : vector<16x8xf32> to vector<16x8xbf16>
    %c0_16 = arith.constant 0 : index
    %c0_17 = arith.constant 0 : index
    %37 = vector.load %arg6[%c0_16, %c0_17] : memref<8x16xbf16, #tpu.memory_space<vmem>>, vector<8x16xbf16>
    %cst_18 = arith.constant dense<0.000000e+00> : vector<16x16xf32>
    %38 = tpu.matmul %36, %37, %cst_18 {dimension_numbers = #tpu.dot_dimension_numbers<[1], [0], [0], [1], [0, 0, 1, 1], [], []>} : vector<16x8xbf16>, vector<8x16xbf16>, vector<16x16xf32> -> vector<16x16xf32>
    %c0_19 = arith.constant 0 : index
    %c0_20 = arith.constant 0 : index
    %39 = vector.load %arg7[%c0_19, %c0_20] : memref<1x16xf32, #tpu.memory_space<vmem>>, vector<1x16xf32>
    %40 = vector.broadcast %39 : vector<1x16xf32> to vector<16x16xf32>
    %41 = arith.addf %38, %40 : vector<16x16xf32>
    %cst_21 = arith.constant 0.000000e+00 : f32
    %42 = vector.broadcast %cst_21 : f32 to vector<16x16xf32>
    %43 = arith.maximumf %41, %42 : vector<16x16xf32>
    %c0_22 = arith.constant 0 : index
    %c0_23 = arith.constant 0 : index
    %44 = vector.load %arg8[%c0_22, %c0_23] : memref<6x16xf32, #tpu.memory_space<vmem>>, vector<6x16xf32>
    %45 = tpu.concatenate %43, %44 in 0 : vector<16x16xf32>, vector<6x16xf32> -> vector<22x16xf32>
    %46 = arith.truncf %45 : vector<22x16xf32> to vector<22x16xbf16>
    %cst_24 = arith.constant dense<0.000000e+00> : vector<24x16xf32>
    %47 = tpu.matmul %0, %46, %cst_24 {dimension_numbers = #tpu.dot_dimension_numbers<[1], [0], [0], [1], [0, 0, 1, 1], [], []>} : vector<24x22xbf16>, vector<22x16xbf16>, vector<24x16xf32> -> vector<24x16xf32>
    %c0_25 = arith.constant 0 : index
    %c0_26 = arith.constant 0 : index
    %48 = vector.load %arg9[%c0_25, %c0_26] : memref<1x16xf32, #tpu.memory_space<vmem>>, vector<1x16xf32>
    %49 = vector.broadcast %48 : vector<1x16xf32> to vector<24x16xf32>
    %50 = arith.addf %47, %49 : vector<24x16xf32>
    %cst_27 = arith.constant 0.000000e+00 : f32
    %51 = vector.broadcast %cst_27 : f32 to vector<24x16xf32>
    %52 = arith.maximumf %50, %51 : vector<24x16xf32>
    %53 = arith.truncf %52 : vector<24x16xf32> to vector<24x16xbf16>
    %cst_28 = arith.constant dense<0.000000e+00> : vector<16x16xf32>
    %54 = tpu.matmul %7, %53, %cst_28 {dimension_numbers = #tpu.dot_dimension_numbers<[1], [0], [0], [1], [0, 0, 1, 1], [], []>} : vector<16x24xbf16>, vector<24x16xbf16>, vector<16x16xf32> -> vector<16x16xf32>
    %55 = arith.addf %54, %43 : vector<16x16xf32>
    %56 = arith.truncf %55 : vector<16x16xf32> to vector<16x16xbf16>
    %c0_29 = arith.constant 0 : index
    %c0_30 = arith.constant 0 : index
    %57 = vector.load %arg10[%c0_29, %c0_30] : memref<16x16xbf16, #tpu.memory_space<vmem>>, vector<16x16xbf16>
    %cst_31 = arith.constant dense<0.000000e+00> : vector<16x16xf32>
    %58 = tpu.matmul %56, %57, %cst_31 {dimension_numbers = #tpu.dot_dimension_numbers<[1], [0], [0], [1], [0, 0, 1, 1], [], []>} : vector<16x16xbf16>, vector<16x16xbf16>, vector<16x16xf32> -> vector<16x16xf32>
    %c0_32 = arith.constant 0 : index
    %c0_33 = arith.constant 0 : index
    %59 = vector.load %arg11[%c0_32, %c0_33] : memref<1x16xf32, #tpu.memory_space<vmem>>, vector<1x16xf32>
    %60 = vector.broadcast %59 : vector<1x16xf32> to vector<16x16xf32>
    %61 = arith.addf %58, %60 : vector<16x16xf32>
    %cst_34 = arith.constant 0.000000e+00 : f32
    %62 = vector.broadcast %cst_34 : f32 to vector<16x16xf32>
    %63 = arith.maximumf %61, %62 : vector<16x16xf32>
    %64 = arith.truncf %63 : vector<16x16xf32> to vector<16x16xbf16>
    %cst_35 = arith.constant dense<0.000000e+00> : vector<2x16xf32>
    %65 = tpu.matmul %14, %64, %cst_35 {dimension_numbers = #tpu.dot_dimension_numbers<[1], [0], [0], [1], [0, 0, 1, 1], [], []>} : vector<2x16xbf16>, vector<16x16xbf16>, vector<2x16xf32> -> vector<2x16xf32>
    %66 = vector.broadcast %21 : vector<2x1xf32> to vector<2x16xf32>
    %67 = arith.mulf %65, %66 : vector<2x16xf32>
    %68 = arith.truncf %67 : vector<2x16xf32> to vector<2x16xbf16>
    %c0_36 = arith.constant 0 : index
    %c0_37 = arith.constant 0 : index
    %69 = vector.load %arg12[%c0_36, %c0_37] : memref<16x4xbf16, #tpu.memory_space<vmem>>, vector<16x4xbf16>
    %cst_38 = arith.constant dense<0.000000e+00> : vector<2x4xf32>
    %70 = tpu.matmul %68, %69, %cst_38 {dimension_numbers = #tpu.dot_dimension_numbers<[1], [0], [0], [1], [0, 0, 1, 1], [], []>} : vector<2x16xbf16>, vector<16x4xbf16>, vector<2x4xf32> -> vector<2x4xf32>
    %c0_39 = arith.constant 0 : index
    %c0_40 = arith.constant 0 : index
    %71 = vector.load %arg13[%c0_39, %c0_40] : memref<1x4xf32, #tpu.memory_space<vmem>>, vector<1x4xf32>
    %72 = vector.broadcast %71 : vector<1x4xf32> to vector<2x4xf32>
    %73 = arith.addf %70, %72 : vector<2x4xf32>
    %cst_41 = arith.constant dense<0xFF800000> : vector<2xf32>
    %74 = vector.multi_reduction <maximumf>, %73, %cst_41 [1] : vector<2x4xf32> to vector<2xf32>
    %75 = vector.shape_cast %74 : vector<2xf32> to vector<2x1xf32>
    %76 = vector.broadcast %75 : vector<2x1xf32> to vector<2x4xf32>
    %77 = arith.subf %73, %76 : vector<2x4xf32>
    %78 = math.exp %77 : vector<2x4xf32>
    %cst_42 = arith.constant dense<0.000000e+00> : vector<2xf32>
    %79 = vector.multi_reduction <add>, %78, %cst_42 [1] : vector<2x4xf32> to vector<2xf32>
    %80 = vector.shape_cast %79 : vector<2xf32> to vector<2x1xf32>
    %81 = vector.broadcast %80 : vector<2x1xf32> to vector<2x4xf32>
    %82 = arith.divf %78, %81 : vector<2x4xf32>
    %c0_43 = arith.constant 0 : index
    %c0_44 = arith.constant 0 : index
    %83 = vector.load %arg14[%c0_43, %c0_44] : memref<2x4xf32, #tpu.memory_space<vmem>>, vector<2x4xf32>
    tpu.vector_store %arg14[%c0_43, %c0_44], %82 {strides = array<i32>} : memref<2x4xf32, #tpu.memory_space<vmem>>, vector<2x4xf32>,
    return
  }
}

</mosaic_0001>

<llo_original>
// kernel: tpu_custom_call.1
$region0: #{tpu_custom_call.1}
  #allocation0 [shape = 'u32[]', space=smem, size = 0x4, offset = 0x4, fixed_abs, tag = 'smem constant byte address 0x4 - core index']
  #allocation1 [shape = 'u32[144,128]{1,0:T(1,128)}', space=vmem, size = 0x12000, scoped, tag = 'internal scratch']
  %s0 = inlined_call_operand.vmem [shape: bf16[24,22], index: 0, kind: input, shape index: {}]
  %s1 = inlined_call_operand.hbm [shape: s32[1,24], index: 1, kind: input, shape index: {}]
  %s2 = inlined_call_operand.hbm [shape: s32[1,16], index: 2, kind: input, shape index: {}]
  %s3 = inlined_call_operand.vmem [shape: bf16[16,8], index: 3, kind: input, shape index: {}]
  %s4 = inlined_call_operand.vmem [shape: f32[6,8], index: 4, kind: input, shape index: {}]
  %s5 = inlined_call_operand.hbm [shape: f32[1,8], index: 5, kind: input, shape index: {}]
  %s6 = inlined_call_operand.vmem [shape: bf16[8,16], index: 6, kind: input, shape index: {}]
  %s7 = inlined_call_operand.vmem [shape: f32[1,16], index: 7, kind: input, shape index: {}]
  %s8 = inlined_call_operand.vmem [shape: f32[6,16], index: 8, kind: input, shape index: {}]
  %s9 = inlined_call_operand.vmem [shape: f32[1,16], index: 9, kind: input, shape index: {}]
  %s10 = inlined_call_operand.vmem [shape: bf16[16,16], index: 10, kind: input, shape index: {}]
  %s11 = inlined_call_operand.vmem [shape: f32[1,16], index: 11, kind: input, shape index: {}]
  %s12 = inlined_call_operand.vmem [shape: bf16[16,4], index: 12, kind: input, shape index: {}]
  %s13 = inlined_call_operand.vmem [shape: f32[1,4], index: 13, kind: input, shape index: {}]
  %s14 = inlined_call_operand.hbm [shape: f32[2,4], index: 14, kind: output, shape index: {}]
  %s15 = sld [smem:[#allocation0]]
  $region78: #{tpu_custom_call.1} parent=0
    _
  %s17 = ssub.s32 1, %s15
  %s18 = scalar_select 0, %s17, %s15
  $region1: #{tpu_custom_call.1} parent=0
    #allocation2 [shape = 'u8[512]{0}', space=vmem, size = 0x400, scoped, tag = 'input window, operand 1, single buffered']
    #allocation3 [shape = 's32[1]{0}', space=sflag, size = 0x4, scoped, tag = 'scoped memory for tpu_custom_call.1']
    #allocation4 [shape = 's32[1]{0}', space=sflag, size = 0x4, scoped, tag = 'scoped memory for tpu_custom_call.1']
    #allocation5 [shape = 'u8[512]{0}', space=vmem, size = 0x400, scoped, tag = 'input window, operand 2, single buffered']
    #allocation6 [shape = 's32[1]{0}', space=sflag, size = 0x4, scoped, tag = 'scoped memory for tpu_custom_call.1']
    #allocation7 [shape = 'u8[512]{0}', space=vmem, size = 0x400, scoped, tag = 'input window, operand 5, single buffered']
    #allocation8 [shape = 'u8[1024]{0}', space=vmem, size = 0x400, scoped, tag = 'output window, operand 0, single buffered']
    %19 = vsyncpa [#allocation3], 0
    %20 = vsyncpa [#allocation6], 0
    %21 = vsyncpa [#allocation4], 0
    // Predicated region
    $region2: #{tpu_custom_call.1} parent=1 // pred_check
      _
    $region3: #{tpu_custom_call.1} parent=1 // pred_check_branch
      %23 = sbr.rel (0) target = $region5
    $region4: #{tpu_custom_call.1} parent=1 // pred_region
      _
    $region5: #{tpu_custom_call.1} parent=1 // pred_fallthru
      _
    // Predicated region
    $region6: #{tpu_custom_call.1} parent=1 // pred_check
      _
    $region7: #{tpu_custom_call.1} parent=1 // pred_check_branch
      %25 = sbr.rel (0) target = $region9
    $region8: #{tpu_custom_call.1} parent=1 // pred_region
      %s27 = ssub.s32 16, 16
      %28 = vsyncadd [#allocation3], %s27
      %s30 = sshll.u32 [#allocation2], 4
      %s31 = int_to_ptr.vmem [resolvable:$true] %s30
      %33 = dma.hbm_to_vmem [thread:$0]  %s1, 16, %s31, [#allocation3]
    $region9: #{tpu_custom_call.1} parent=1 // pred_fallthru
      _
    // Predicated region
    $region10: #{tpu_custom_call.1} parent=1 // pred_check
      _
    $region11: #{tpu_custom_call.1} parent=1 // pred_check_branch
      %35 = sbr.rel (0) target = $region13
    $region12: #{tpu_custom_call.1} parent=1 // pred_region
      %s37 = ssub.s32 16, 16
      %38 = vsyncadd [#allocation6], %s37
      %s40 = sshll.u32 [#allocation5], 4
      %s41 = int_to_ptr.vmem [resolvable:$true] %s40
      %43 = dma.hbm_to_vmem [thread:$0]  %s2, 16, %s41, [#allocation6]
    $region13: #{tpu_custom_call.1} parent=1 // pred_fallthru
      _
    // Predicated region
    $region14: #{tpu_custom_call.1} parent=1 // pred_check
      _
    $region15: #{tpu_custom_call.1} parent=1 // pred_check_branch
      %45 = sbr.rel (0) target = $region17
    $region16: #{tpu_custom_call.1} parent=1 // pred_region
      _
    $region17: #{tpu_custom_call.1} parent=1 // pred_fallthru
      _
    // Predicated region
    $region18: #{tpu_custom_call.1} parent=1 // pred_check
      _
    $region19: #{tpu_custom_call.1} parent=1 // pred_check_branch
      %47 = sbr.rel (0) target = $region21
    $region20: #{tpu_custom_call.1} parent=1 // pred_region
      _
    $region21: #{tpu_custom_call.1} parent=1 // pred_fallthru
      _
    // Predicated region
    $region22: #{tpu_custom_call.1} parent=1 // pred_check
      _
    $region23: #{tpu_custom_call.1} parent=1 // pred_check_branch
      %49 = sbr.rel (0) target = $region25
    $region24: #{tpu_custom_call.1} parent=1 // pred_region
      %s51 = ssub.s32 16, 16
      %52 = vsyncadd [#allocation6], %s51
      %s54 = sshll.u32 [#allocation7], 4
      %s55 = int_to_ptr.vmem [resolvable:$true] %s54
      %57 = dma.hbm_to_vmem [thread:$0]  %s5, 16, %s55, [#allocation6]
    $region25: #{tpu_custom_call.1} parent=1 // pred_fallthru
      _
    // Predicated region
    $region26: #{tpu_custom_call.1} parent=1 // pred_check
      _
    $region27: #{tpu_custom_call.1} parent=1 // pred_check_branch
      %59 = sbr.rel (0) target = $region29
    $region28: #{tpu_custom_call.1} parent=1 // pred_region
      _
    $region29: #{tpu_custom_call.1} parent=1 // pred_fallthru
      _
    // Predicated region
    $region30: #{tpu_custom_call.1} parent=1 // pred_check
      _
    $region31: #{tpu_custom_call.1} parent=1 // pred_check_branch
      %61 = sbr.rel (0) target = $region33
    $region32: #{tpu_custom_call.1} parent=1 // pred_region
      _
    $region33: #{tpu_custom_call.1} parent=1 // pred_fallthru
      _
    // Predicated region
    $region34: #{tpu_custom_call.1} parent=1 // pred_check
      _
    $region35: #{tpu_custom_call.1} parent=1 // pred_check_branch
      %63 = sbr.rel (0) target = $region37
    $region36: #{tpu_custom_call.1} parent=1 // pred_region
      _
    $region37: #{tpu_custom_call.1} parent=1 // pred_fallthru
      _
    // Predicated region
    $region38: #{tpu_custom_call.1} parent=1 // pred_check
      _
    $region39: #{tpu_custom_call.1} parent=1 // pred_check_branch
      %65 = sbr.rel (0) target = $region41
    $region40: #{tpu_custom_call.1} parent=1 // pred_region
      _
    $region41: #{tpu_custom_call.1} parent=1 // pred_fallthru
      _
    // Predicated region
    $region42: #{tpu_custom_call.1} parent=1 // pred_check
      _
    $region43: #{tpu_custom_call.1} parent=1 // pred_check_branch
      %67 = sbr.rel (0) target = $region45
    $region44: #{tpu_custom_call.1} parent=1 // pred_region
      _
    $region45: #{tpu_custom_call.1} parent=1 // pred_fallthru
      _
    // Predicated region
    $region46: #{tpu_custom_call.1} parent=1 // pred_check
      _
    $region47: #{tpu_custom_call.1} parent=1 // pred_check_branch
      %69 = sbr.rel (0) target = $region49
    $region48: #{tpu_custom_call.1} parent=1 // pred_region
      _
    $region49: #{tpu_custom_call.1} parent=1 // pred_fallthru
      _
    // Predicated region
    $region50: #{tpu_custom_call.1} parent=1 // pred_check
      _
    $region51: #{tpu_custom_call.1} parent=1 // pred_check_branch
      %71 = sbr.rel (0) target = $region53
    $region52: #{tpu_custom_call.1} parent=1 // pred_region
      _
    $region53: #{tpu_custom_call.1} parent=1 // pred_fallthru
      _
    // Predicated region
    $region54: #{tpu_custom_call.1} parent=1 // pred_check
      _
    $region55: #{tpu_custom_call.1} parent=1 // pred_check_branch
      %73 = sbr.rel (0) target = $region57
    $region56: #{tpu_custom_call.1} parent=1 // pred_region
      _
    $region57: #{tpu_custom_call.1} parent=1 // pred_fallthru
      _
    // Predicated region
    $region58: #{tpu_custom_call.1} parent=1 // pred_check
      _
    $region59: #{tpu_custom_call.1} parent=1 // pred_check_branch
      %75 = sbr.rel (0) target = $region61
    $region60: #{tpu_custom_call.1} parent=1 // pred_region
      %76 = dma.done [#allocation3], 16
    $region61: #{tpu_custom_call.1} parent=1 // pred_fallthru
      _
    // Predicated region
    $region62: #{tpu_custom_call.1} parent=1 // pred_check
      _
    $region63: #{tpu_custom_call.1} parent=1 // pred_check_branch
      %78 = sbr.rel (0) target = $region65
    $region64: #{tpu_custom_call.1} parent=1 // pred_region
      %79 = dma.done [#allocation6], 16
    $region65: #{tpu_custom_call.1} parent=1 // pred_fallthru
      _
    // Predicated region
    $region66: #{tpu_custom_call.1} parent=1 // pred_check
      _
    $region67: #{tpu_custom_call.1} parent=1 // pred_check_branch
      %81 = sbr.rel (0) target = $region69
    $region68: #{tpu_custom_call.1} parent=1 // pred_region
      %82 = dma.done [#allocation6], 16
    $region69: #{tpu_custom_call.1} parent=1 // pred_fallthru
      _
    %v84 = vld [vmem:[%s0] sm:$0xf]
    %v85 = vld [vmem:[%s0 + $0x4] sm:$0xf]
    %v86 = vld [vmem:[%s0 + $0x8] sm:$0xf]
    %v87 = vlaneseq
    %v88 = vshrl.u32 %v87, 7
    %v89 = vadd.s32 %v88, 8
    %v90 = vld [vmem:[#allocation2] sm:$0x1]
    %v91 = vlaneseq
    %v92 = vshrl.u32 %v91, 7
    %v93 = vsub.s32 0, %v92
    %v94 = vrot.slane %v90, %v93
    %vm95 = vcmp.eq.s32.totalorder %v88, %v94
    %vm96 = vcmp.eq.s32.totalorder %v89, %v94
    %v97 = vsel %vm95, 1, 0
    %v98 = vsel %vm96, 1, 0
    %v99 = vcvt.s32.f32 %v97
    %v100 = vcvt.s32.f32 %v98
    %v101 = vpack.c.bf16 %v100, %v99
    %v102 = vld [vmem:[#allocation5] sm:$0x1]
    %v103 = vlaneseq
    %v104 = vshrl.u32 %v103, 7
    %v105 = vsub.s32 0, %v104
    %v106 = vrot.slane %v102, %v105
    %vm107 = vcmp.eq.s32.totalorder %v88, %v106
    %v108 = vsel %vm107, 1, 0
    %v109 = vcvt.s32.f32 %v108
    %v110 = vpack.c.bf16 %v109, %v109
    %v111 = vunpack.c.l.bf16 %v110
    %vm112 = vcmask 123904
    %v113 = vsel %vm112, %v111, 0.0
    %114 = vadd.xlane.f32.xlu0 %v113
    %v115 = vpop.xlane.xlu0 %114
    %v116 = vmax.f32 %v115, 1.0
    %v117 = vrcp.pop %v116
    %v118 = vmul.f32 1.0, %v117
    %v119 = vld [vmem:[%s3] sm:$0xf]
    %v120 = vld [vmem:[%s3 + $0x4] sm:$0xf]
    %v121 = vunpack.c.l.bf16 %v119
    %v122 = vunpack.c.l.bf16 %v120
    %v123 = vld [vmem:[%s4] sm:$0x3f]
    %v124 = vpack.c.bf16 %v122, %v121
    %v125 = vpack.c.bf16 %v123, %v123
    %v126 = vld [vmem:[#allocation7] sm:$0x1]
    %v128 = vlaneseq
    %v129 = vshrl.u32 %v128, 7
    %v130 = vsub.s32 0, %v129
    %v131 = vrot.slane %v126, %v130
    %v136 = vunpack.c.l.b16 %v84
    %v137 = vunpack.c.l.b16 %v85
    %v138 = vunpack.c.l.b16 %v86
    %v139 = vpack.c.b16 %v137, %v136
    %v140 = vpack.c.b16 %v138, %v138
    %vm141 = vcmask 179200
    %v143 = vsel %vm141, %v139, 0
    %v146 = vsel %vm141, %v140, 0
    %vm148 = vcmask 1042432
    %v150 = vsel %vm148, %v125, 0
    %152 = vmatprep.subr.bf16.mxu0 0
    %153 = vmatpush1.bf16.msra.mxu0 %v124
    %154 = vmatprep.subr.bf16.mxu0 0
    %155 = vmatpush1.bf16.msra.mxu0 %v150
    %156 = vmatprep.subr.bf16.mxu0 0
    %157 = vmatpush1.bf16.msra.mxu0 0
    %158 = vmatprep.subr.bf16.mxu0 0
    %159 = vmatpush1.bf16.msra.mxu0 0
    %160 = vmatprep.subr.bf16.mxu0 0
    %161 = vmatpush1.bf16.msra.mxu0 0
    %162 = vmatprep.subr.bf16.mxu0 0
    %163 = vmatpush1.bf16.msra.mxu0 0
    %164 = vmatprep.subr.bf16.mxu0 0
    %165 = vmatpush1.bf16.msra.mxu0 0
    %166 = vmatprep.subr.bf16.mxu0 0
    %167 = vmatpush1.bf16.msra.mxu0 0
    %168 = vmatprep.subr.bf16.mxu0 0
    %169 = vmatpush1.bf16.msra.mxu0 0
    %170 = vmatprep.subr.bf16.mxu0 0
    %171 = vmatpush1.bf16.msra.mxu0 0
    %172 = vmatprep.subr.bf16.mxu0 0
    %173 = vmatpush1.bf16.msra.mxu0 0
    %174 = vmatprep.subr.bf16.mxu0 0
    %175 = vmatpush1.bf16.msra.mxu0 0
    %176 = vmatprep.subr.bf16.mxu0 0
    %177 = vmatpush1.bf16.msra.mxu0 0
    %178 = vmatprep.subr.bf16.mxu0 0
    %179 = vmatpush1.bf16.msra.mxu0 0
    %180 = vmatprep.subr.bf16.mxu0 0
    %181 = vmatpush1.bf16.msra.mxu0 0
    %182 = vmatprep.subr.bf16.mxu0 0
    %183 = vmatpush1.bf16.msra.mxu0 0
    %184 = vmatprep.mubr.bf16.mxu0 0
    %185 = vmatmul.mubr.bf16.gmra.mrb[0].mxu0 %v143
    %v186 = vpop.f32.mrb[0].mxu0
    %v187 = vadd.f32 %v131, %v186
    %v188 = vpop.f32.mrb[0].mxu0
    %v189 = vpop.f32.mrb[0].mxu0
    %v190 = vadd.f32 %v131, %v189
    %v191 = vpop.f32.mrb[0].mxu0
    %192 = vmatprep.mubr.bf16.mxu0 0
    %193 = vmatmul.mubr.bf16.gmra.mrb[0].mxu0 %v146
    %v194 = vpop.f32.mrb[0].mxu0
    %v195 = vadd.f32 %v131, %v194
    %v196 = vpop.f32.mrb[0].mxu0
    %v197 = vpop.f32.mrb[0].mxu0
    %v198 = vpop.f32.mrb[0].mxu0
    %199 = vdwg.mxu0
    %v200 = vmax.f32 %v187, 0.0
    %v201 = vmax.f32 %v190, 0.0
    %v202 = vmax.f32 %v195, 0.0
    %v203 = vpack.c.bf16 %v201, %v200
    %v204 = vpack.c.bf16 %v202, %v202
    %vm205 = vcmask 195584
    %v207 = vsel %vm205, %v101, 0
    %vm209 = vcmask 1043456
    %v211 = vsel %vm209, %v204, 0
    %213 = vmatprep.subr.bf16.mxu0 0
    %214 = vmatpush1.bf16.msra.mxu0 %v203
    %215 = vmatprep.subr.bf16.mxu0 0
    %216 = vmatpush1.bf16.msra.mxu0 %v211
    %217 = vmatprep.subr.bf16.mxu0 0
    %218 = vmatpush1.bf16.msra.mxu0 0
    %219 = vmatprep.subr.bf16.mxu0 0
    %220 = vmatpush1.bf16.msra.mxu0 0
    %221 = vmatprep.subr.bf16.mxu0 0
    %222 = vmatpush1.bf16.msra.mxu0 0
    %223 = vmatprep.subr.bf16.mxu0 0
    %224 = vmatpush1.bf16.msra.mxu0 0
    %225 = vmatprep.subr.bf16.mxu0 0
    %226 = vmatpush1.bf16.msra.mxu0 0
    %227 = vmatprep.subr.bf16.mxu0 0
    %228 = vmatpush1.bf16.msra.mxu0 0
    %229 = vmatprep.subr.bf16.mxu0 0
    %230 = vmatpush1.bf16.msra.mxu0 0
    %231 = vmatprep.subr.bf16.mxu0 0
    %232 = vmatpush1.bf16.msra.mxu0 0
    %233 = vmatprep.subr.bf16.mxu0 0
    %234 = vmatpush1.bf16.msra.mxu0 0
    %235 = vmatprep.subr.bf16.mxu0 0
    %236 = vmatpush1.bf16.msra.mxu0 0
    %237 = vmatprep.subr.bf16.mxu0 0
    %238 = vmatpush1.bf16.msra.mxu0 0
    %239 = vmatprep.subr.bf16.mxu0 0
    %240 = vmatpush1.bf16.msra.mxu0 0
    %241 = vmatprep.subr.bf16.mxu0 0
    %242 = vmatpush1.bf16.msra.mxu0 0
    %243 = vmatprep.subr.bf16.mxu0 0
    %244 = vmatpush1.bf16.msra.mxu0 0
    %245 = vmatprep.mubr.bf16.mxu0 0
    %246 = vmatmul.mubr.bf16.gmra.mrb[0].mxu0 %v207
    %v247 = vpop.f32.mrb[0].mxu0
    %v248 = vadd.f32 %v121, %v247
    %v249 = vpop.f32.mrb[0].mxu0
    %v250 = vpop.f32.mrb[0].mxu0
    %v251 = vadd.f32 %v122, %v250
    %v252 = vpop.f32.mrb[0].mxu0
    %253 = vdwg.mxu0
    %v254 = vpack.c.bf16 %v251, %v248
    %v255 = vld [vmem:[%s6] sm:$0xf]
    %v256 = vld [vmem:[%s7] sm:$0x1]
    %v258 = vlaneseq
    %v259 = vshrl.u32 %v258, 7
    %v260 = vsub.s32 0, %v259
    %v261 = vrot.slane %v256, %v260
    %vm263 = vcmask 64512
    %v265 = vsel %vm263, %v254, 0
    %v268 = vsel %vm209, %v255, 0
    %270 = vmatprep.subr.bf16.mxu0 0
    %271 = vmatpush1.bf16.msra.mxu0 %v268
    %272 = vmatprep.subr.bf16.mxu0 0
    %273 = vmatpush1.bf16.msra.mxu0 0
    %274 = vmatprep.subr.bf16.mxu0 0
    %275 = vmatpush1.bf16.msra.mxu0 0
    %276 = vmatprep.subr.bf16.mxu0 0
    %277 = vmatpush1.bf16.msra.mxu0 0
    %278 = vmatprep.subr.bf16.mxu0 0
    %279 = vmatpush1.bf16.msra.mxu0 0
    %280 = vmatprep.subr.bf16.mxu0 0
    %281 = vmatpush1.bf16.msra.mxu0 0
    %282 = vmatprep.subr.bf16.mxu0 0
    %283 = vmatpush1.bf16.msra.mxu0 0
    %284 = vmatprep.subr.bf16.mxu0 0
    %285 = vmatpush1.bf16.msra.mxu0 0
    %286 = vmatprep.subr.bf16.mxu0 0
    %287 = vmatpush1.bf16.msra.mxu0 0
    %288 = vmatprep.subr.bf16.mxu0 0
    %289 = vmatpush1.bf16.msra.mxu0 0
    %290 = vmatprep.subr.bf16.mxu0 0
    %291 = vmatpush1.bf16.msra.mxu0 0
    %292 = vmatprep.subr.bf16.mxu0 0
    %293 = vmatpush1.bf16.msra.mxu0 0
    %294 = vmatprep.subr.bf16.mxu0 0
    %295 = vmatpush1.bf16.msra.mxu0 0
    %296 = vmatprep.subr.bf16.mxu0 0
    %297 = vmatpush1.bf16.msra.mxu0 0
    %298 = vmatprep.subr.bf16.mxu0 0
    %299 = vmatpush1.bf16.msra.mxu0 0
    %300 = vmatprep.subr.bf16.mxu0 0
    %301 = vmatpush1.bf16.msra.mxu0 0
    %302 = vmatprep.mubr.bf16.mxu0 0
    %303 = vmatmul.mubr.bf16.gmra.mrb[0].mxu0 %v265
    %v304 = vpop.f32.mrb[0].mxu0
    %v305 = vadd.f32 %v261, %v304
    %v306 = vpop.f32.mrb[0].mxu0
    %v307 = vpop.f32.mrb[0].mxu0
    %v308 = vadd.f32 %v261, %v307
    %v309 = vpop.f32.mrb[0].mxu0
    %310 = vdwg.mxu0
    %v311 = vmax.f32 %v305, 0.0
    %v312 = vmax.f32 %v308, 0.0
    %v313 = vld [vmem:[%s8] sm:$0x3f]
    %v314 = vpack.c.bf16 %v312, %v311
    %v315 = vpack.c.bf16 %v313, %v313
    %v316 = vld [vmem:[%s9] sm:$0x1]
    %v318 = vlaneseq
    %v319 = vshrl.u32 %v318, 7
    %v320 = vsub.s32 0, %v319
    %v321 = vrot.slane %v316, %v320
    %v324 = vsel %vm148, %v315, 0
    %326 = vmatprep.subr.bf16.mxu0 0
    %327 = vmatpush1.bf16.msra.mxu0 %v314
    %328 = vmatprep.subr.bf16.mxu0 0
    %329 = vmatpush1.bf16.msra.mxu0 %v324
    %330 = vmatprep.subr.bf16.mxu0 0
    %331 = vmatpush1.bf16.msra.mxu0 0
    %332 = vmatprep.subr.bf16.mxu0 0
    %333 = vmatpush1.bf16.msra.mxu0 0
    %334 = vmatprep.subr.bf16.mxu0 0
    %335 = vmatpush1.bf16.msra.mxu0 0
    %336 = vmatprep.subr.bf16.mxu0 0
    %337 = vmatpush1.bf16.msra.mxu0 0
    %338 = vmatprep.subr.bf16.mxu0 0
    %339 = vmatpush1.bf16.msra.mxu0 0
    %340 = vmatprep.subr.bf16.mxu0 0
    %341 = vmatpush1.bf16.msra.mxu0 0
    %342 = vmatprep.subr.bf16.mxu0 0
    %343 = vmatpush1.bf16.msra.mxu0 0
    %344 = vmatprep.subr.bf16.mxu0 0
    %345 = vmatpush1.bf16.msra.mxu0 0
    %346 = vmatprep.subr.bf16.mxu0 0
    %347 = vmatpush1.bf16.msra.mxu0 0
    %348 = vmatprep.subr.bf16.mxu0 0
    %349 = vmatpush1.bf16.msra.mxu0 0
    %350 = vmatprep.subr.bf16.mxu0 0
    %351 = vmatpush1.bf16.msra.mxu0 0
    %352 = vmatprep.subr.bf16.mxu0 0
    %353 = vmatpush1.bf16.msra.mxu0 0
    %354 = vmatprep.subr.bf16.mxu0 0
    %355 = vmatpush1.bf16.msra.mxu0 0
    %356 = vmatprep.subr.bf16.mxu0 0
    %357 = vmatpush1.bf16.msra.mxu0 0
    %358 = vmatprep.mubr.bf16.mxu0 0
    %359 = vmatmul.mubr.bf16.gmra.mrb[0].mxu0 %v143
    %v360 = vpop.f32.mrb[0].mxu0
    %v361 = vadd.f32 %v321, %v360
    %v362 = vpop.f32.mrb[0].mxu0
    %v363 = vpop.f32.mrb[0].mxu0
    %v364 = vadd.f32 %v321, %v363
    %v365 = vpop.f32.mrb[0].mxu0
    %366 = vmatprep.mubr.bf16.mxu0 0
    %367 = vmatmul.mubr.bf16.gmra.mrb[0].mxu0 %v146
    %v368 = vpop.f32.mrb[0].mxu0
    %v369 = vadd.f32 %v321, %v368
    %v370 = vpop.f32.mrb[0].mxu0
    %v371 = vpop.f32.mrb[0].mxu0
    %v372 = vpop.f32.mrb[0].mxu0
    %373 = vdwg.mxu0
    %v374 = vmax.f32 %v361, 0.0
    %v375 = vmax.f32 %v364, 0.0
    %v376 = vmax.f32 %v369, 0.0
    %v377 = vpack.c.bf16 %v375, %v374
    %v378 = vpack.c.bf16 %v376, %v376
    %v380 = vsel %vm209, %v378, 0
    %382 = vmatprep.subr.bf16.mxu0 0
    %383 = vmatpush1.bf16.msra.mxu0 %v377
    %384 = vmatprep.subr.bf16.mxu0 0
    %385 = vmatpush1.bf16.msra.mxu0 %v380
    %386 = vmatprep.subr.bf16.mxu0 0
    %387 = vmatpush1.bf16.msra.mxu0 0
    %388 = vmatprep.subr.bf16.mxu0 0
    %389 = vmatpush1.bf16.msra.mxu0 0
    %390 = vmatprep.subr.bf16.mxu0 0
    %391 = vmatpush1.bf16.msra.mxu0 0
    %392 = vmatprep.subr.bf16.mxu0 0
    %393 = vmatpush1.bf16.msra.mxu0 0
    %394 = vmatprep.subr.bf16.mxu0 0
    %395 = vmatpush1.bf16.msra.mxu0 0
    %396 = vmatprep.subr.bf16.mxu0 0
    %397 = vmatpush1.bf16.msra.mxu0 0
    %398 = vmatprep.subr.bf16.mxu0 0
    %399 = vmatpush1.bf16.msra.mxu0 0
    %400 = vmatprep.subr.bf16.mxu0 0
    %401 = vmatpush1.bf16.msra.mxu0 0
    %402 = vmatprep.subr.bf16.mxu0 0
    %403 = vmatpush1.bf16.msra.mxu0 0
    %404 = vmatprep.subr.bf16.mxu0 0
    %405 = vmatpush1.bf16.msra.mxu0 0
    %406 = vmatprep.subr.bf16.mxu0 0
    %407 = vmatpush1.bf16.msra.mxu0 0
    %408 = vmatprep.subr.bf16.mxu0 0
    %409 = vmatpush1.bf16.msra.mxu0 0
    %410 = vmatprep.subr.bf16.mxu0 0
    %411 = vmatpush1.bf16.msra.mxu0 0
    %412 = vmatprep.subr.bf16.mxu0 0
    %413 = vmatpush1.bf16.msra.mxu0 0
    %414 = vmatprep.mubr.bf16.mxu0 0
    %415 = vmatmul.mubr.bf16.gmra.mrb[0].mxu0 %v207
    %v416 = vpop.f32.mrb[0].mxu0
    %v417 = vadd.f32 %v311, %v416
    %v418 = vpop.f32.mrb[0].mxu0
    %v419 = vpop.f32.mrb[0].mxu0
    %v420 = vadd.f32 %v312, %v419
    %v421 = vpop.f32.mrb[0].mxu0
    %422 = vdwg.mxu0
    %v423 = vpack.c.bf16 %v420, %v417
    %v424 = vld [vmem:[%s10] sm:$0xf]
    %v425 = vld [vmem:[%s10 + $0x4] sm:$0xf]
    %v426 = vld [vmem:[%s11] sm:$0x1]
    %v428 = vlaneseq
    %v429 = vshrl.u32 %v428, 7
    %v430 = vsub.s32 0, %v429
    %v431 = vrot.slane %v426, %v430
    %v435 = vunpack.c.l.b16 %v424
    %v436 = vunpack.c.l.b16 %v425
    %v437 = vpack.c.b16 %v436, %v435
    %vm439 = vcmask 130048
    %v441 = vsel %vm439, %v423, 0
    %443 = vmatprep.subr.bf16.mxu0 0
    %444 = vmatpush1.bf16.msra.mxu0 %v437
    %445 = vmatprep.subr.bf16.mxu0 0
    %446 = vmatpush1.bf16.msra.mxu0 0
    %447 = vmatprep.subr.bf16.mxu0 0
    %448 = vmatpush1.bf16.msra.mxu0 0
    %449 = vmatprep.subr.bf16.mxu0 0
    %450 = vmatpush1.bf16.msra.mxu0 0
    %451 = vmatprep.subr.bf16.mxu0 0
    %452 = vmatpush1.bf16.msra.mxu0 0
    %453 = vmatprep.subr.bf16.mxu0 0
    %454 = vmatpush1.bf16.msra.mxu0 0
    %455 = vmatprep.subr.bf16.mxu0 0
    %456 = vmatpush1.bf16.msra.mxu0 0
    %457 = vmatprep.subr.bf16.mxu0 0
    %458 = vmatpush1.bf16.msra.mxu0 0
    %459 = vmatprep.subr.bf16.mxu0 0
    %460 = vmatpush1.bf16.msra.mxu0 0
    %461 = vmatprep.subr.bf16.mxu0 0
    %462 = vmatpush1.bf16.msra.mxu0 0
    %463 = vmatprep.subr.bf16.mxu0 0
    %464 = vmatpush1.bf16.msra.mxu0 0
    %465 = vmatprep.subr.bf16.mxu0 0
    %466 = vmatpush1.bf16.msra.mxu0 0
    %467 = vmatprep.subr.bf16.mxu0 0
    %468 = vmatpush1.bf16.msra.mxu0 0
    %469 = vmatprep.subr.bf16.mxu0 0
    %470 = vmatpush1.bf16.msra.mxu0 0
    %471 = vmatprep.subr.bf16.mxu0 0
    %472 = vmatpush1.bf16.msra.mxu0 0
    %473 = vmatprep.subr.bf16.mxu0 0
    %474 = vmatpush1.bf16.msra.mxu0 0
    %475 = vmatprep.mubr.bf16.mxu0 0
    %476 = vmatmul.mubr.bf16.gmra.mrb[0].mxu0 %v441
    %v477 = vpop.f32.mrb[0].mxu0
    %v478 = vadd.f32 %v431, %v477
    %v479 = vpop.f32.mrb[0].mxu0
    %v480 = vpop.f32.mrb[0].mxu0
    %v481 = vadd.f32 %v431, %v480
    %v482 = vpop.f32.mrb[0].mxu0
    %483 = vdwg.mxu0
    %v484 = vmax.f32 %v478, 0.0
    %v485 = vmax.f32 %v481, 0.0
    %v486 = vpack.c.bf16 %v485, %v484
    %v488 = vsel %vm439, %v110, 0
    %490 = vmatprep.subr.bf16.mxu0 0
    %491 = vmatpush1.bf16.msra.mxu0 %v486
    %492 = vmatprep.subr.bf16.mxu0 0
    %493 = vmatpush1.bf16.msra.mxu0 0
    %494 = vmatprep.subr.bf16.mxu0 0
    %495 = vmatpush1.bf16.msra.mxu0 0
    %496 = vmatprep.subr.bf16.mxu0 0
    %497 = vmatpush1.bf16.msra.mxu0 0
    %498 = vmatprep.subr.bf16.mxu0 0
    %499 = vmatpush1.bf16.msra.mxu0 0
    %500 = vmatprep.subr.bf16.mxu0 0
    %501 = vmatpush1.bf16.msra.mxu0 0
    %502 = vmatprep.subr.bf16.mxu0 0
    %503 = vmatpush1.bf16.msra.mxu0 0
    %504 = vmatprep.subr.bf16.mxu0 0
    %505 = vmatpush1.bf16.msra.mxu0 0
    %506 = vmatprep.subr.bf16.mxu0 0
    %507 = vmatpush1.bf16.msra.mxu0 0
    %508 = vmatprep.subr.bf16.mxu0 0
    %509 = vmatpush1.bf16.msra.mxu0 0
    %510 = vmatprep.subr.bf16.mxu0 0
    %511 = vmatpush1.bf16.msra.mxu0 0
    %512 = vmatprep.subr.bf16.mxu0 0
    %513 = vmatpush1.bf16.msra.mxu0 0
    %514 = vmatprep.subr.bf16.mxu0 0
    %515 = vmatpush1.bf16.msra.mxu0 0
    %516 = vmatprep.subr.bf16.mxu0 0
    %517 = vmatpush1.bf16.msra.mxu0 0
    %518 = vmatprep.subr.bf16.mxu0 0
    %519 = vmatpush1.bf16.msra.mxu0 0
    %520 = vmatprep.subr.bf16.mxu0 0
    %521 = vmatpush1.bf16.msra.mxu0 0
    %522 = vmatprep.mubr.bf16.mxu0 0
    %523 = vmatmul.mubr.bf16.gmra.mrb[0].mxu0 %v488
    %v524 = vpop.f32.mrb[0].mxu0
    %v525 = vadd.f32 0.0, %v524
    %v526 = vpop.f32.mrb[0].mxu0
    %v527 = vpop.f32.mrb[0].mxu0
    %v528 = vpop.f32.mrb[0].mxu0
    %529 = vdwg.mxu0
    %v530 = vmul.f32 %v525, %v118
    %v531 = vpack.c.bf16 %v530, %v530
    %v532 = vld [vmem:[%s12] sm:$0xf]
    %v533 = vld [vmem:[%s12 + $0x4] sm:$0xf]
    %v534 = vld [vmem:[%s13] sm:$0x1]
    %v536 = vlaneseq
    %v537 = vshrl.u32 %v536, 7
    %v538 = vsub.s32 0, %v537
    %v539 = vrot.slane %v534, %v538
    %v543 = vunpack.c.l.b16 %v532
    %v544 = vunpack.c.l.b16 %v533
    %v545 = vpack.c.b16 %v544, %v543
    %v548 = vsel %vm439, %v531, 0
    %550 = vmatprep.subr.bf16.mxu0 0
    %551 = vmatpush1.bf16.msra.mxu0 %v545
    %552 = vmatprep.subr.bf16.mxu0 0
    %553 = vmatpush1.bf16.msra.mxu0 0
    %554 = vmatprep.subr.bf16.mxu0 0
    %555 = vmatpush1.bf16.msra.mxu0 0
    %556 = vmatprep.subr.bf16.mxu0 0
    %557 = vmatpush1.bf16.msra.mxu0 0
    %558 = vmatprep.subr.bf16.mxu0 0
    %559 = vmatpush1.bf16.msra.mxu0 0
    %560 = vmatprep.subr.bf16.mxu0 0
    %561 = vmatpush1.bf16.msra.mxu0 0
    %562 = vmatprep.subr.bf16.mxu0 0
    %563 = vmatpush1.bf16.msra.mxu0 0
    %564 = vmatprep.subr.bf16.mxu0 0
    %565 = vmatpush1.bf16.msra.mxu0 0
    %566 = vmatprep.subr.bf16.mxu0 0
    %567 = vmatpush1.bf16.msra.mxu0 0
    %568 = vmatprep.subr.bf16.mxu0 0
    %569 = vmatpush1.bf16.msra.mxu0 0
    %570 = vmatprep.subr.bf16.mxu0 0
    %571 = vmatpush1.bf16.msra.mxu0 0
    %572 = vmatprep.subr.bf16.mxu0 0
    %573 = vmatpush1.bf16.msra.mxu0 0
    %574 = vmatprep.subr.bf16.mxu0 0
    %575 = vmatpush1.bf16.msra.mxu0 0
    %576 = vmatprep.subr.bf16.mxu0 0
    %577 = vmatpush1.bf16.msra.mxu0 0
    %578 = vmatprep.subr.bf16.mxu0 0
    %579 = vmatpush1.bf16.msra.mxu0 0
    %580 = vmatprep.subr.bf16.mxu0 0
    %581 = vmatpush1.bf16.msra.mxu0 0
    %582 = vmatprep.mubr.bf16.mxu0 0
    %583 = vmatmul.mubr.bf16.gmra.mrb[0].mxu0 %v548
    %v584 = vpop.f32.mrb[0].mxu0
    %v585 = vadd.f32 %v539, %v584
    %v586 = vpop.f32.mrb[0].mxu0
    %v587 = vpop.f32.mrb[0].mxu0
    %v588 = vpop.f32.mrb[0].mxu0
    %589 = vdwg.mxu0
    %vm590 = vcmask 25600
    %v591 = vsel %vm590, %v585, -inf
    %592 = vmax.xlane.f32.xlu0 %v591
    %v593 = vpop.xlane.xlu0 %592
    %v594 = vsub.f32 %v585, %v593
    %v595 = vmul.f32 %v594, 1.442695
    %v596 = vpow.pop %v595
    %v597 = vsel %vm590, %v596, 0.0
    %598 = vadd.xlane.f32.xlu0 %v597
    %v599 = vpop.xlane.xlu0 %598
    %v600 = vrcp.pop %v599
    %v601 = vmul.f32 %v596, %v600
    %602 = vst.msk [vmem:[#allocation8] sm:$0x3] %vm590, %v601
    // Predicated region
    $region70: #{tpu_custom_call.1} parent=1 // pred_check
      _
    $region71: #{tpu_custom_call.1} parent=1 // pred_check_branch
      %604 = sbr.rel (0) target = $region73
    $region72: #{tpu_custom_call.1} parent=1 // pred_region
      %s606 = ssub.s32 32, 32
      %607 = vsyncadd [#allocation4], %s606
      %s609 = sshll.u32 [#allocation8], 4
      %s610 = int_to_ptr.vmem [resolvable:$true] %s609
      %612 = dma.vmem_to_hbm [thread:$0]  %s610, 32, %s14, [#allocation4]
    $region73: #{tpu_custom_call.1} parent=1 // pred_fallthru
      _
    // Predicated region
    $region74: #{tpu_custom_call.1} parent=1 // pred_check
      _
    $region75: #{tpu_custom_call.1} parent=1 // pred_check_branch
      %614 = sbr.rel (0) target = $region77
    $region76: #{tpu_custom_call.1} parent=1 // pred_region
      %615 = dma.done [#allocation4], 32
    $region77: #{tpu_custom_call.1} parent=1 // pred_fallthru
      _
    %616 = vsyncpa [#allocation3], 1
    %617 = vsyncpa [#allocation6], 1
    %618 = vsyncpa [#allocation4], 1

</llo_original>
